<compile_context>
chip_gen: v6e
topology: v6e:2x2x1
jax: 0.10.0
libtpu: 0.0.40
codegen_flags: <defaults>
</compile_context>

<pallas_src>
import numpy as np
import jax
import jax.numpy as jnp
from jax.experimental import pallas as pl
from jax.experimental.pallas import tpu as pltpu


# Contract the pixel axis: (BIN, P) x (BIN, P) -> (BIN, BIN)
_DN = (((1,), (1,)), ((), ()))


def _physical_vmem_bytes():
    try:
        info = pltpu.get_tpu_info()
        v = getattr(info, "vmem_capacity_bytes", None)
        if v:
            return int(v)
    except Exception:
        pass
    return 64 << 20  # conservative fallback (v7x-sized)


def _make_soft_hist(b, w, valid, uniform_weight, w_scalar, feat_dtype):
    """(1, t_hw) pixel row -> (BIN, t_hw) soft triangular bin responses.

    Folded form: resp = max(1 - |x * w_s + b_s|, 0) with
      w_s = w*(B-1)/2,  b_s = w*(B-1)/2 + b*(B-1)
    which equals relu(1 - (B-1)*|((x+1)/2)*w + b|) of the original module.
    """
    def soft_hist(x_row, mask_out):
        x = x_row.astype(jnp.float32)
        if valid is not None:
            # Sanitize padded lanes (partial-edge DMA leaves arbitrary data there).
            x = jnp.where(valid, x, 0.0)
        a = (x * w_scalar if uniform_weight else x * w) + b
        r = jnp.maximum(1.0 - jnp.abs(a), 0.0)
        if valid is not None and mask_out:
            # Zero one factor of the outer product -> padded pixels contribute 0,
            # independent of the conv weight values.
            r = jnp.where(valid, r, 0.0)
        return r.astype(feat_dtype)
    return soft_hist


def _make_fused_kernel(hw, t_hw, delta, needs_mask, uniform_weight, w_scalar,
                       feat_dtype):
    inv_hw = 1.0 / float(hw)
    delta_f = float(delta)

    def kernel(xi_ref, xr_ref, w_ref, b_ref, out_ref, acc_i, acc_r):
        t = pl.program_id(1)
        nt = pl.num_programs(1)

        @pl.when(t == 0)
        def _():
            acc_i[...] = jnp.zeros_like(acc_i)
            acc_r[...] = jnp.zeros_like(acc_r)

        b = b_ref[...]                                   # (BIN, 1) folded bias
        w = None if uniform_weight else w_ref[...]       # (BIN, 1) folded weight
        valid = None
        if needs_mask:
            lane = jax.lax.broadcasted_iota(jnp.int32, (1, t_hw), 1)
            valid = (t * t_hw + lane) < hw
        soft_hist = _make_soft_hist(b, w, valid, uniform_weight, w_scalar,
                                    feat_dtype)

        # Interleave feature maps and matmuls: only 2 (BIN, t_hw) maps live at once.
        xi = xi_ref[...]                                 # (1, 2, t_hw)
        hia = soft_hist(xi[:, 0, :], True)
        hib = soft_hist(xi[:, 1, :], False)
        acc_i[...] += jax.lax.dot_general(
            hib, hia, _DN, preferred_element_type=jnp.float32)

        xr = xr_ref[...]
        hra = soft_hist(xr[:, 0, :], True)
        hrb = soft_hist(xr[:, 1, :], False)
        acc_r[...] += jax.lax.dot_general(
            hrb, hra, _DN, preferred_element_type=jnp.float32)

        @pl.when(t == nt - 1)
        def _():
            hi = acc_i[...] * inv_hw                     # AvgPool2d == mean over pixels
            hr = acc_r[...] * inv_hw
            mann = jnp.abs(hi - hr)
            loss = jnp.where(mann < delta_f,
                             0.5 * mann * mann / delta_f,
                             mann - 0.5 * delta_f)
            out_ref[...] = loss[None].astype(out_ref.dtype)

    return kernel


def _make_partial_kernel(hw, t_hw, tiles_per_split, needs_mask, uniform_weight,
                         w_scalar, feat_dtype):
    def kernel(xi_ref, xr_ref, w_ref, b_ref, oi_ref, or_ref, acc_i, acc_r):
        s = pl.program_id(1)
        t = pl.program_id(2)
        nt = pl.num_programs(2)

        @pl.when(t == 0)
        def _():
            acc_i[...] = jnp.zeros_like(acc_i)
            acc_r[...] = jnp.zeros_like(acc_r)

        b = b_ref[...]
        w = None if uniform_weight else w_ref[...]
        valid = None
        if needs_mask:
            g = s * tiles_per_split + t                  # logical (unclamped) tile idx
            lane = jax.lax.broadcasted_iota(jnp.int32, (1, t_hw), 1)
            valid = (g * t_hw + lane) < hw
        soft_hist = _make_soft_hist(b, w, valid, uniform_weight, w_scalar,
                                    feat_dtype)

        xi = xi_ref[...]
        hia = soft_hist(xi[:, 0, :], True)
        hib = soft_hist(xi[:, 1, :], False)
        acc_i[...] += jax.lax.dot_general(
            hib, hia, _DN, preferred_element_type=jnp.float32)

        xr = xr_ref[...]
        hra = soft_hist(xr[:, 0, :], True)
        hrb = soft_hist(xr[:, 1, :], False)
        acc_r[...] += jax.lax.dot_general(
            hrb, hra, _DN, preferred_element_type=jnp.float32)

        @pl.when(t == nt - 1)
        def _():
            oi_ref[...] = acc_i[...][None, None].astype(oi_ref.dtype)
            or_ref[...] = acc_r[...][None, None].astype(or_ref.dtype)

    return kernel


def histogram_loss_2channel(inp_image, ref_image, weight, bias, *,
                            bin_num, delta=0.01, t_hw=None, pixel_splits=1,
                            feat_dtype=jnp.float32):
    """Forward pass of HistogramLoss_2channel.

    inp_image, ref_image: (N, C>=2, H, W), values nominally in [-1, 1]
    weight: (bin_num,1,1,1) conv weight     bias: (bin_num,) conv bias
    pixel_splits: >1 splits the pixel-reduction axis onto a second "parallel"
      grid axis (useful on v7x when N is 1 so both TensorCores have work).
    feat_dtype: dtype of the soft-histogram feature maps fed to the MXU
      (jnp.bfloat16 is an opt-in speedup at large BIN; validate vs delta first).
    Returns (N, 1, bin_num, bin_num) Huber loss between the two 2D histograms.
    """
    N, C, H, W = inp_image.shape
    assert ref_image.shape == inp_image.shape and C >= 2
    hw = H * W
    bin_num = int(bin_num)

    # --- inputs: keep original dtype (no wrapper-side f32 materialization) and
    #     keep NCHW; flattening HW onto the lane axis is a free reshape. -------
    if C == 2:
        xi = inp_image.reshape(N, 2, hw)
        xr = ref_image.reshape(N, 2, hw)
    else:
        # TODO(synk): C > 2 needs a channel slice (one extra HBM copy of the two used channels).
        xi = inp_image[:, :2].reshape(N, 2, hw)
        xr = ref_image[:, :2].reshape(N, 2, hw)

    # --- fold (x+1)/2 and the (bin_num-1) scale into the conv weight/bias -----
    w_flat = weight.reshape(bin_num).astype(jnp.float32)
    b_flat = bias.reshape(bin_num).astype(jnp.float32)
    half_scale = (bin_num - 1) / 2.0
    w_s = (w_flat * half_scale).reshape(bin_num, 1)
    b_s = (w_flat * half_scale + b_flat * float(bin_num - 1)).reshape(bin_num, 1)

    # Static fast path for the frozen ones-initialised conv weight: drop the
    # per-(bin, pixel) multiply, bake the scale as a scalar constant.
    uniform_weight = False
    w_scalar = 0.0
    try:
        w_np = np.asarray(w_flat)            # raises for tracers -> general path
        if w_np.size > 0 and np.all(w_np == w_np.reshape(-1)[0]):
            uniform_weight = True
            w_scalar = float(w_np.reshape(-1)[0]) * half_scale
    except Exception:
        pass

    # --- pixel-tile size: as large as the per-generation VMEM budget allows ---
    in_bytes = jnp.dtype(xi.dtype).itemsize
    bin_pad = max(8, ((bin_num + 7) // 8) * 8)
    # Per-lane VMEM: 2 inputs x double-buffer x 8-sublane-padded block, plus
    # ~2 live (BIN, t_hw) f32 feature maps (+ slack for elementwise temps).
    per_lane_bytes = 2 * 2 * 8 * in_bytes + 3 * bin_pad * 4
    phys_vmem = _physical_vmem_bytes()
    budget = int(phys_vmem * 0.45)
    auto_t = max(128, (budget // per_lane_bytes) // 128 * 128)
    if t_hw is None:
        t_hw = min(32768, auto_t)
    else:
        t_hw = max(128, (int(t_hw) // 128) * 128)
    if hw <= t_hw:
        t_hw = hw                            # full-extent block (any size allowed)
    num_t = pl.cdiv(hw, t_hw)

    need_bytes = per_lane_bytes * t_hw + 4 * bin_pad * max(bin_pad, 128) * 4
    vmem_limit = int(min(phys_vmem * 0.9,
                         max(2 * need_bytes + (16 << 20), 32 << 20)))

    pixel_splits = 1 if pixel_splits is None else int(pixel_splits)

    # ---------------- default path: fully fused, Huber in-kernel --------------
    if pixel_splits <= 1 or num_t == 1:
        needs_mask = (hw % t_hw) != 0
        kernel = _make_fused_kernel(hw, t_hw, delta, needs_mask,
                                    uniform_weight, w_scalar, feat_dtype)
        out = pl.pallas_call(
            kernel,
            out_shape=jax.ShapeDtypeStruct((N, bin_num, bin_num), jnp.float32),
            grid_spec=pltpu.PrefetchScalarGridSpec(
                num_scalar_prefetch=0,
                grid=(N, num_t),
                in_specs=[
                    pl.BlockSpec((1, 2, t_hw), lambda n, t: (n, 0, t)),
                    pl.BlockSpec((1, 2, t_hw), lambda n, t: (n, 0, t)),
                    pl.BlockSpec((bin_num, 1), lambda n, t: (0, 0)),
                    pl.BlockSpec((bin_num, 1), lambda n, t: (0, 0)),
                ],
                out_specs=pl.BlockSpec((1, bin_num, bin_num),
                                       lambda n, t: (n, 0, 0)),
                scratch_shapes=[pltpu.VMEM((bin_num, bin_num), jnp.float32),
                                pltpu.VMEM((bin_num, bin_num), jnp.float32)],
            ),
            compiler_params=pltpu.CompilerParams(
                dimension_semantics=("parallel", "arbitrary"),
                vmem_limit_bytes=vmem_limit),
        )(xi, xr, w_s, b_s)
        # HuberLoss sums over dim=1 (size 1) with keepdim -> (N, 1, BIN, BIN).
        return out.reshape(N, 1, bin_num, bin_num)

    # -------- megacore path: split pixel tiles over a 2nd parallel axis -------
    S = pixel_splits
    tps = pl.cdiv(num_t, S)
    needs_mask = (S * tps * t_hw) != hw
    clamp = num_t - 1
    kernel = _make_partial_kernel(hw, t_hw, tps, needs_mask,
                                  uniform_weight, w_scalar, feat_dtype)

    def img_map(n, s, t):
        # Clamp so over-hanging splits re-read an in-bounds tile (fully masked).
        return (n, 0, jnp.minimum(s * tps + t, clamp))

    part_i, part_r = pl.pallas_call(
        kernel,
        out_shape=(jax.ShapeDtypeStruct((N, S, bin_num, bin_num), jnp.float32),
                   jax.ShapeDtypeStruct((N, S, bin_num, bin_num), jnp.float32)),
        grid_spec=pltpu.PrefetchScalarGridSpec(
            num_scalar_prefetch=0,
            grid=(N, S, tps),
            in_specs=[
                pl.BlockSpec((1, 2, t_hw), img_map),
                pl.BlockSpec((1, 2, t_hw), img_map),
                pl.BlockSpec((bin_num, 1), lambda n, s, t: (0, 0)),
                pl.BlockSpec((bin_num, 1), lambda n, s, t: (0, 0)),
            ],
            out_specs=[
                pl.BlockSpec((1, 1, bin_num, bin_num),
                             lambda n, s, t: (n, s, 0, 0)),
                pl.BlockSpec((1, 1, bin_num, bin_num),
                             lambda n, s, t: (n, s, 0, 0)),
            ],
            scratch_shapes=[pltpu.VMEM((bin_num, bin_num), jnp.float32),
                            pltpu.VMEM((bin_num, bin_num), jnp.float32)],
        ),
        compiler_params=pltpu.CompilerParams(
            dimension_semantics=("parallel", "parallel", "arbitrary"),
            vmem_limit_bytes=vmem_limit),
    )(xi, xr, w_s, b_s)

    # Tiny epilogue: combine per-split partial histograms, then Huber.
    hi = part_i.sum(axis=1) * (1.0 / float(hw))
    hr = part_r.sum(axis=1) * (1.0 / float(hw))
    mann = jnp.abs(hi - hr)
    loss = jnp.where(mann < delta, 0.5 * mann * mann / delta, mann - 0.5 * delta)
    return loss[:, None]


def _reference(inp, ref, w_flat, b_flat, bin_num, delta):
    """Pure-JAX port of the PyTorch forward (for correctness checking)."""
    def hist_feats(x):  # x: (N, H, W), already (t+1)/2-scaled
        a1 = x[:, None] * w_flat[None, :, None, None] + b_flat[None, :, None, None]
        return jnp.maximum(1.0 - jnp.abs(a1) * (bin_num - 1), 0.0)

    def hist2d(t):
        N, _, H, W = t.shape
        ha = hist_feats((t[:, 0] + 1.0) / 2.0).reshape(N, bin_num, H * W)
        hb = hist_feats((t[:, 1] + 1.0) / 2.0).reshape(N, bin_num, H * W)
        h2 = jnp.einsum('nip,njp->nij', hb, ha,
                        precision=jax.lax.Precision.HIGHEST) / (H * W)
        return h2[:, None]

    hi, hg = hist2d(inp), hist2d(ref)
    mann = jnp.abs(hi - hg)
    mask = (mann < delta).astype(hi.dtype)
    eucl = 0.5 * mann ** 2
    loss = eucl * mask / delta + (mann - 0.5 * delta) * (1.0 - mask)
    return jnp.sum(loss, axis=1, keepdims=True)


if __name__ == "__main__":
    BIN = 8
    DELTA = 0.01
    key = jax.random.PRNGKey(0)
    k1, k2, k3, k4 = jax.random.split(key, 4)

    # HistogramNet.init_biased_conv1: weight = ones(BIN,1,1,1), bias = -arange(-1,1,2/BIN)
    weight = jnp.ones((BIN, 1, 1, 1), dtype=jnp.float32)
    bias = -jnp.arange(-1.0, 1.0, 2.0 / BIN, dtype=jnp.float32)
    w_ref_flat = weight.reshape(BIN)

    # --- 1) default fused path, N=2, 16x16 ------------------------------------
    N, C, H, W = 2, 2, 16, 16
    inp = jax.random.uniform(k1, (N, C, H, W), jnp.float32, -1.0, 1.0)
    ref = jax.random.uniform(k2, (N, C, H, W), jnp.float32, -1.0, 1.0)
    out = histogram_loss_2channel(inp, ref, weight, bias, bin_num=BIN, delta=DELTA)
    out = jax.block_until_ready(out)
    gold = _reference(inp, ref, w_ref_flat, bias, BIN, DELTA)
    assert out.shape == (N, 1, BIN, BIN)
    assert jnp.allclose(out, gold, atol=1e-5, rtol=1e-4), \
        float(jnp.max(jnp.abs(out - gold)))

    # --- 2) bf16 inputs (in-kernel upcast, no wrapper copy) -------------------
    inp_bf = inp.astype(jnp.bfloat16)
    ref_bf = ref.astype(jnp.bfloat16)
    out_bf = histogram_loss_2channel(inp_bf, ref_bf, weight, bias,
                                     bin_num=BIN, delta=DELTA)
    out_bf = jax.block_until_ready(out_bf)
    gold_bf = _reference(inp_bf.astype(jnp.float32), ref_bf.astype(jnp.float32),
                         w_ref_flat, bias, BIN, DELTA)
    assert jnp.allclose(out_bf, gold_bf, atol=2e-5, rtol=1e-4)

    # --- 3) megacore split path, N=1, exact tiling ----------------------------
    out_s = histogram_loss_2channel(inp[:1], ref[:1], weight, bias, bin_num=BIN,
                                    delta=DELTA, t_hw=128, pixel_splits=2)
    out_s = jax.block_until_ready(out_s)
    gold_s = _reference(inp[:1], ref[:1], w_ref_flat, bias, BIN, DELTA)
    assert jnp.allclose(out_s, gold_s, atol=1e-5, rtol=1e-4)

    # --- 4) non-divisible HW (tail mask) on both paths ------------------------
    inp3 = jax.random.uniform(k3, (1, 2, 18, 18), jnp.float32, -1.0, 1.0)
    ref3 = jax.random.uniform(k4, (1, 2, 18, 18), jnp.float32, -1.0, 1.0)
    gold3 = _reference(inp3, ref3, w_ref_flat, bias, BIN, DELTA)
    out3a = histogram_loss_2channel(inp3, ref3, weight, bias, bin_num=BIN,
                                    delta=DELTA, t_hw=128)
    out3b = histogram_loss_2channel(inp3, ref3, weight, bias, bin_num=BIN,
                                    delta=DELTA, t_hw=128, pixel_splits=2)
    jax.block_until_ready((out3a, out3b))
    assert jnp.allclose(out3a, gold3, atol=1e-5, rtol=1e-4)
    assert jnp.allclose(out3b, gold3, atol=1e-5, rtol=1e-4)

    print("KERNEL_OK")
</pallas_src>

<mosaic_0001>
module attributes {stable_mosaic.version = 11 : i64} {
  func.func @kernel(%arg0: i32, %arg1: i32, %arg2: memref<1x2x256xf32, #tpu.memory_space<vmem>>, %arg3: memref<1x2x256xf32, #tpu.memory_space<vmem>>, %arg4: memref<8x1xf32, #tpu.memory_space<vmem>>, %arg5: memref<8x1xf32, #tpu.memory_space<vmem>>, %arg6: memref<1x8x8xf32, #tpu.memory_space<vmem>>, %arg7: memref<8x8xf32, #tpu.memory_space<vmem>>, %arg8: memref<8x8xf32, #tpu.memory_space<vmem>>) attributes {dimension_semantics = [#tpu.dimension_semantics<parallel>, #tpu.dimension_semantics<arbitrary>], iteration_bounds = array<i64: 2, 1>, scalar_prefetch = 0 : i64, scratch_operands = 2 : i64, tpu.core_type = #tpu.core_type<tc>, window_params = [{transform_indices = @transform_0, window_bounds = array<i64: 1, 2, 256>}, {transform_indices = @transform_1, window_bounds = array<i64: 1, 2, 256>}, {pipeline_mode = #tpu.pipeline_mode<synchronous>, transform_indices = @transform_2, window_bounds = array<i64: 8, 1>}, {pipeline_mode = #tpu.pipeline_mode<synchronous>, transform_indices = @transform_3, window_bounds = array<i64: 8, 1>}, {transform_indices = @transform_4, window_bounds = array<i64: 1, 8, 8>}]} {
    %c0_i32 = arith.constant 0 : i32
    %0 = arith.cmpi eq, %arg1, %c0_i32 : i32
    %1 = arith.extui %0 : i1 to i32
    %c0_i32_0 = arith.constant 0 : i32
    %2 = arith.cmpi ne, %1, %c0_i32_0 : i32
    scf.if %2 {
      %cst_31 = arith.constant 0.000000e+00 : f32
      %65 = vector.broadcast %cst_31 : f32 to vector<8x8xf32>
      %c0_32 = arith.constant 0 : index
      %c0_33 = arith.constant 0 : index
      %66 = vector.load %arg7[%c0_32, %c0_33] : memref<8x8xf32, #tpu.memory_space<vmem>>, vector<8x8xf32>
      tpu.vector_store %arg7[%c0_32, %c0_33], %65 {strides = array<i32>} : memref<8x8xf32, #tpu.memory_space<vmem>>, vector<8x8xf32>,
      %cst_34 = arith.constant 0.000000e+00 : f32
      %67 = vector.broadcast %cst_34 : f32 to vector<8x8xf32>
      %c0_35 = arith.constant 0 : index
      %c0_36 = arith.constant 0 : index
      %68 = vector.load %arg8[%c0_35, %c0_36] : memref<8x8xf32, #tpu.memory_space<vmem>>, vector<8x8xf32>
      tpu.vector_store %arg8[%c0_35, %c0_36], %67 {strides = array<i32>} : memref<8x8xf32, #tpu.memory_space<vmem>>, vector<8x8xf32>,
    } else {
    }
    %c0 = arith.constant 0 : index
    %c0_1 = arith.constant 0 : index
    %3 = vector.load %arg5[%c0, %c0_1] : memref<8x1xf32, #tpu.memory_space<vmem>>, vector<8x1xf32>
    %c0_2 = arith.constant 0 : index
    %c0_3 = arith.constant 0 : index
    %c0_4 = arith.constant 0 : index
    %4 = vector.load %arg2[%c0_2, %c0_3, %c0_4] : memref<1x2x256xf32, #tpu.memory_space<vmem>>, vector<1x2x256xf32>
    %5 = vector.extract_strided_slice %4 {offsets = [0, 0, 0], sizes = [1, 1, 256], strides = [1, 1, 1]} : vector<1x2x256xf32> to vector<1x1x256xf32>
    %6 = vector.shape_cast %5 : vector<1x1x256xf32> to vector<1x256xf32>
    %cst = arith.constant 3.500000e+00 : f32
    %7 = vector.broadcast %cst : f32 to vector<1x256xf32>
    %8 = arith.mulf %6, %7 : vector<1x256xf32>
    %9 = vector.broadcast %8 : vector<1x256xf32> to vector<8x256xf32>
    %10 = vector.broadcast %3 : vector<8x1xf32> to vector<8x256xf32>
    %11 = arith.addf %9, %10 : vector<8x256xf32>
    %12 = math.absf %11 : vector<8x256xf32>
    %cst_5 = arith.constant 1.000000e+00 : f32
    %13 = vector.broadcast %cst_5 : f32 to vector<8x256xf32>
    %14 = arith.subf %13, %12 : vector<8x256xf32>
    %cst_6 = arith.constant 0.000000e+00 : f32
    %15 = vector.broadcast %cst_6 : f32 to vector<8x256xf32>
    %16 = arith.maximumf %14, %15 : vector<8x256xf32>
    %17 = vector.extract_strided_slice %4 {offsets = [0, 1, 0], sizes = [1, 1, 256], strides = [1, 1, 1]} : vector<1x2x256xf32> to vector<1x1x256xf32>
    %18 = vector.shape_cast %17 : vector<1x1x256xf32> to vector<1x256xf32>
    %cst_7 = arith.constant 3.500000e+00 : f32
    %19 = vector.broadcast %cst_7 : f32 to vector<1x256xf32>
    %20 = arith.mulf %18, %19 : vector<1x256xf32>
    %21 = vector.broadcast %20 : vector<1x256xf32> to vector<8x256xf32>
    %22 = vector.broadcast %3 : vector<8x1xf32> to vector<8x256xf32>
    %23 = arith.addf %21, %22 : vector<8x256xf32>
    %24 = math.absf %23 : vector<8x256xf32>
    %cst_8 = arith.constant 1.000000e+00 : f32
    %25 = vector.broadcast %cst_8 : f32 to vector<8x256xf32>
    %26 = arith.subf %25, %24 : vector<8x256xf32>
    %cst_9 = arith.constant 0.000000e+00 : f32
    %27 = vector.broadcast %cst_9 : f32 to vector<8x256xf32>
    %28 = arith.maximumf %26, %27 : vector<8x256xf32>
    %c0_10 = arith.constant 0 : index
    %c0_11 = arith.constant 0 : index
    %29 = vector.load %arg7[%c0_10, %c0_11] : memref<8x8xf32, #tpu.memory_space<vmem>>, vector<8x8xf32>
    %cst_12 = arith.constant dense<0.000000e+00> : vector<8x8xf32>
    %30 = tpu.matmul %28, %16, %cst_12 {dimension_numbers = #tpu.dot_dimension_numbers<[1], [1], [0], [0], [0, 0, 1, 0], [], []>} : vector<8x256xf32>, vector<8x256xf32>, vector<8x8xf32> -> vector<8x8xf32>
    %31 = arith.addf %29, %30 : vector<8x8xf32>
    %c0_13 = arith.constant 0 : index
    %c0_14 = arith.constant 0 : index
    %32 = vector.load %arg7[%c0_13, %c0_14] : memref<8x8xf32, #tpu.memory_space<vmem>>, vector<8x8xf32>
    tpu.vector_store %arg7[%c0_13, %c0_14], %31 {strides = array<i32>} : memref<8x8xf32, #tpu.memory_space<vmem>>, vector<8x8xf32>,
    %c0_15 = arith.constant 0 : index
    %c0_16 = arith.constant 0 : index
    %c0_17 = arith.constant 0 : index
    %33 = vector.load %arg3[%c0_15, %c0_16, %c0_17] : memref<1x2x256xf32, #tpu.memory_space<vmem>>, vector<1x2x256xf32>
    %34 = vector.extract_strided_slice %33 {offsets = [0, 0, 0], sizes = [1, 1, 256], strides = [1, 1, 1]} : vector<1x2x256xf32> to vector<1x1x256xf32>
    %35 = vector.shape_cast %34 : vector<1x1x256xf32> to vector<1x256xf32>
    %cst_18 = arith.constant 3.500000e+00 : f32
    %36 = vector.broadcast %cst_18 : f32 to vector<1x256xf32>
    %37 = arith.mulf %35, %36 : vector<1x256xf32>
    %38 = vector.broadcast %37 : vector<1x256xf32> to vector<8x256xf32>
    %39 = vector.broadcast %3 : vector<8x1xf32> to vector<8x256xf32>
    %40 = arith.addf %38, %39 : vector<8x256xf32>
    %41 = math.absf %40 : vector<8x256xf32>
    %cst_19 = arith.constant 1.000000e+00 : f32
    %42 = vector.broadcast %cst_19 : f32 to vector<8x256xf32>
    %43 = arith.subf %42, %41 : vector<8x256xf32>
    %cst_20 = arith.constant 0.000000e+00 : f32
    %44 = vector.broadcast %cst_20 : f32 to vector<8x256xf32>
    %45 = arith.maximumf %43, %44 : vector<8x256xf32>
    %46 = vector.extract_strided_slice %33 {offsets = [0, 1, 0], sizes = [1, 1, 256], strides = [1, 1, 1]} : vector<1x2x256xf32> to vector<1x1x256xf32>
    %47 = vector.shape_cast %46 : vector<1x1x256xf32> to vector<1x256xf32>
    %cst_21 = arith.constant 3.500000e+00 : f32
    %48 = vector.broadcast %cst_21 : f32 to vector<1x256xf32>
    %49 = arith.mulf %47, %48 : vector<1x256xf32>
    %50 = vector.broadcast %49 : vector<1x256xf32> to vector<8x256xf32>
    %51 = vector.broadcast %3 : vector<8x1xf32> to vector<8x256xf32>
    %52 = arith.addf %50, %51 : vector<8x256xf32>
    %53 = math.absf %52 : vector<8x256xf32>
    %cst_22 = arith.constant 1.000000e+00 : f32
    %54 = vector.broadcast %cst_22 : f32 to vector<8x256xf32>
    %55 = arith.subf %54, %53 : vector<8x256xf32>
    %cst_23 = arith.constant 0.000000e+00 : f32
    %56 = vector.broadcast %cst_23 : f32 to vector<8x256xf32>
    %57 = arith.maximumf %55, %56 : vector<8x256xf32>
    %c0_24 = arith.constant 0 : index
    %c0_25 = arith.constant 0 : index
    %58 = vector.load %arg8[%c0_24, %c0_25] : memref<8x8xf32, #tpu.memory_space<vmem>>, vector<8x8xf32>
    %cst_26 = arith.constant dense<0.000000e+00> : vector<8x8xf32>
    %59 = tpu.matmul %57, %45, %cst_26 {dimension_numbers = #tpu.dot_dimension_numbers<[1], [1], [0], [0], [0, 0, 1, 0], [], []>} : vector<8x256xf32>, vector<8x256xf32>, vector<8x8xf32> -> vector<8x8xf32>
    %60 = arith.addf %58, %59 : vector<8x8xf32>
    %c0_27 = arith.constant 0 : index
    %c0_28 = arith.constant 0 : index
    %61 = vector.load %arg8[%c0_27, %c0_28] : memref<8x8xf32, #tpu.memory_space<vmem>>, vector<8x8xf32>
    tpu.vector_store %arg8[%c0_27, %c0_28], %60 {strides = array<i32>} : memref<8x8xf32, #tpu.memory_space<vmem>>, vector<8x8xf32>,
    %c0_i32_29 = arith.constant 0 : i32
    %62 = arith.cmpi eq, %arg1, %c0_i32_29 : i32
    %63 = arith.extui %62 : i1 to i32
    %c0_i32_30 = arith.constant 0 : i32
    %64 = arith.cmpi ne, %63, %c0_i32_30 : i32
    scf.if %64 {
      %c0_31 = arith.constant 0 : index
      %c0_32 = arith.constant 0 : index
      %65 = vector.load %arg7[%c0_31, %c0_32] : memref<8x8xf32, #tpu.memory_space<vmem>>, vector<8x8xf32>
      %cst_33 = arith.constant 3.906250e-03 : f32
      %66 = vector.broadcast %cst_33 : f32 to vector<8x8xf32>
      %67 = arith.mulf %65, %66 : vector<8x8xf32>
      %c0_34 = arith.constant 0 : index
      %c0_35 = arith.constant 0 : index
      %68 = vector.load %arg8[%c0_34, %c0_35] : memref<8x8xf32, #tpu.memory_space<vmem>>, vector<8x8xf32>
      %cst_36 = arith.constant 3.906250e-03 : f32
      %69 = vector.broadcast %cst_36 : f32 to vector<8x8xf32>
      %70 = arith.mulf %68, %69 : vector<8x8xf32>
      %71 = arith.subf %67, %70 : vector<8x8xf32>
      %72 = math.absf %71 : vector<8x8xf32>
      %cst_37 = arith.constant 0.00999999977 : f32
      %73 = vector.broadcast %cst_37 : f32 to vector<8x8xf32>
      %74 = arith.cmpf olt, %72, %73 : vector<8x8xf32>
      %cst_38 = arith.constant 5.000000e-01 : f32
      %75 = vector.broadcast %cst_38 : f32 to vector<8x8xf32>
      %76 = arith.mulf %75, %72 : vector<8x8xf32>
      %77 = arith.mulf %76, %72 : vector<8x8xf32>
      %cst_39 = arith.constant 0.00999999977 : f32
      %78 = vector.broadcast %cst_39 : f32 to vector<8x8xf32>
      %79 = arith.divf %77, %78 : vector<8x8xf32>
      %cst_40 = arith.constant 5.000000e-03 : f32
      %80 = vector.broadcast %cst_40 : f32 to vector<8x8xf32>
      %81 = arith.subf %72, %80 : vector<8x8xf32>
      %82 = arith.select %74, %79, %81 : vector<8x8xi1>, vector<8x8xf32>
      %83 = vector.shape_cast %82 : vector<8x8xf32> to vector<1x8x8xf32>
      %c0_41 = arith.constant 0 : index
      %c0_42 = arith.constant 0 : index
      %c0_43 = arith.constant 0 : index
      %84 = vector.load %arg6[%c0_41, %c0_42, %c0_43] : memref<1x8x8xf32, #tpu.memory_space<vmem>>, vector<1x8x8xf32>
      tpu.vector_store %arg6[%c0_41, %c0_42, %c0_43], %83 {strides = array<i32>} : memref<1x8x8xf32, #tpu.memory_space<vmem>>, vector<1x8x8xf32>,
    } else {
    }
    return
  }
  func.func @transform_0(%arg0: i32, %arg1: i32) -> (i32, i32, i32) {
    %c0_i32 = arith.constant 0 : i32
    %c0_i32_0 = arith.constant 0 : i32
    return %arg0, %c0_i32, %arg1 : i32, i32, i32
  }
  func.func @transform_1(%arg0: i32, %arg1: i32) -> (i32, i32, i32) {
    %c0_i32 = arith.constant 0 : i32
    %c0_i32_0 = arith.constant 0 : i32
    return %arg0, %c0_i32, %arg1 : i32, i32, i32
  }
  func.func @transform_2(%arg0: i32, %arg1: i32) -> (i32, i32) {
    %c0_i32 = arith.constant 0 : i32
    %c0_i32_0 = arith.constant 0 : i32
    %c0_i32_1 = arith.constant 0 : i32
    return %c0_i32, %c0_i32_0 : i32, i32
  }
  func.func @transform_3(%arg0: i32, %arg1: i32) -> (i32, i32) {
    %c0_i32 = arith.constant 0 : i32
    %c0_i32_0 = arith.constant 0 : i32
    %c0_i32_1 = arith.constant 0 : i32
    return %c0_i32, %c0_i32_0 : i32, i32
  }
  func.func @transform_4(%arg0: i32, %arg1: i32) -> (i32, i32, i32) {
    %c0_i32 = arith.constant 0 : i32
    %c0_i32_0 = arith.constant 0 : i32
    %c0_i32_1 = arith.constant 0 : i32
    return %arg0, %c0_i32, %c0_i32_0 : i32, i32, i32
  }
}

</mosaic_0001>

<llo_original>
// kernel: tpu_custom_call.1
$region0: #{tpu_custom_call.1}
  #allocation0 [shape = 'u32[]', space=smem, size = 0x4, offset = 0x4, fixed_abs, tag = 'smem constant byte address 0x4 - core index']
  #allocation1 [shape = 'u32[144,128]{1,0:T(1,128)}', space=vmem, size = 0x12000, scoped, tag = 'internal scratch']
  #allocation2 [shape = 'f32[8,8]{1,0:T(8,128)}', space=vmem, size = 0x1000, scoped, tag = 'scratch operand']
  #allocation3 [shape = 'f32[8,8]{1,0:T(8,128)}', space=vmem, size = 0x1000, scoped, tag = 'scratch operand']
  %s0 = inlined_call_operand.vmem [shape: f32[2,2,256], index: 0, kind: input, shape index: {}]
  %s1 = inlined_call_operand.vmem [shape: f32[2,2,256], index: 1, kind: input, shape index: {}]
  %s2 = inlined_call_operand.vmem [shape: f32[8,1], index: 2, kind: input, shape index: {}]
  %s3 = inlined_call_operand.vmem [shape: f32[8,1], index: 3, kind: input, shape index: {}]
  %s4 = inlined_call_operand.hbm [shape: f32[2,8,8], index: 4, kind: output, shape index: {}]
  %s5 = sld [smem:[#allocation0]]
  $region57: #{tpu_custom_call.1} parent=0
    _
  %s7 = ssub.s32 1, %s5
  %s8 = scalar_select 0, %s7, %s5
  $region1: #{tpu_custom_call.1} parent=0
    #allocation4 [shape = 'u8[8192]{0}', space=vmem, size = 0x2000, scoped, tag = 'output window, operand 0']
    #allocation5 [shape = 's32[2]{0}', space=sflag, size = 0x8, scoped, tag = 'scoped memory for tpu_custom_call.1']
    %9 = vsyncpa [#allocation5], 0
    %s10 = scalar_lea.sflag [#allocation5], 1
    %11 = vsyncpa %s10, 0
    loop: start=0, step=1, limit=4
    $region2: #{tpu_custom_call.1} parent=1 // loop_pre_header
      _
    $region3: #{tpu_custom_call.1} parent=1 // loop_header
      %s13 = sphi 0, %s17
      %p14 = scmp.ge.s32.totalorder %s13, 4
      %s20 = sphi 0, %s32
      %s21 = sphi 0, %s28
      %s22 = sphi 0, %s20
      %s23 = sphi 0, %s21
      %s24 = sphi 0, %s22
      %s25 = sphi 0, %s23
      %s37 = sphi 0, %s39
      %s40 = sphi 0, %s37
      %s41 = sphi 0, %s40
      %s57 = sphi 0, %s41
      %s65 = sphi 0, %s67
      %s68 = sphi 0, %s65
      %s69 = sphi 0, %s68
      %s85 = sphi 0, %s69
      %s89 = sphi 0, %s89
      %s91 = sphi 0, %s89
      %s92 = sphi 0, %s91
      %s106 = sphi 0, %s92
      %s110 = sphi 0, %s110
      %s112 = sphi 0, %s110
      %s113 = sphi 0, %s112
      %s127 = sphi 0, %s113
      %s133 = sphi 0, %s135
      %s136 = sphi 0, %s133
      %s137 = sphi 0, %s136
      %s153 = sphi 0, %s137
    $region4: #{tpu_custom_call.1} parent=1 // loop_header_branch
      %16 = sbr.rel (%p14) target = $region8
    $region5: #{tpu_custom_call.1} parent=1 // loop_body
      %s18 = ssub.s32 %s13, 1
      %s19 = ssub.s32 %s13, 2
      %s26 = sadd.s32 1, %s21
      %p27 = scmp.ge.s32.totalorder %s26, 1
      %s28 = scalar_select %p27, 0, %s26
      %s29 = sadd.s32 1, %s20
      %s30 = scalar_select %p27, %s29, %s20
      %p31 = scmp.ge.s32.totalorder %s30, 2
      %s32 = scalar_select %p31, 0, %s30
      %s33 = ssub.s32 %s20, %s32
      %s34 = ssub.s32 %s21, %s28
      %s35 = sor.u32 %s33, %s34
      %p36 = scmp.eq.s32.totalorder %s35, 0
      %s38 = sadd.s32 %s37, 1
      %s39 = scalar_select %p36, %s37, %s38
      %p42 = pneg %p36
      %p43 = scmp.eq.s32.totalorder %s13, 1
      %p44 = por %p42, %p43
      %p45 = scmp.ne.s32.totalorder %s37, %s40
      %p46 = scmp.eq.s32.totalorder %s13, 0
      %p47 = por %p45, %p46
      %p48 = scmp.ne.s32.totalorder %s37, %s40
      %p49 = scmp.eq.s32.totalorder %s18, 1
      %p50 = por %p48, %p49
      %p51 = scmp.ne.s32.totalorder %s40, %s41
      %p52 = scmp.eq.s32.totalorder %s18, 0
      %p53 = por %p51, %p52
      %p54 = scmp.ne.s32.totalorder %s40, %s41
      %p55 = scmp.eq.s32.totalorder %s19, 1
      %p56 = por %p54, %p55
      %p58 = scmp.ne.s32.totalorder %s41, %s57
      %p59 = scmp.eq.s32.totalorder %s19, 0
      %p60 = por %p58, %p59
      %s61 = ssub.s32 %s20, %s32
      %s62 = ssub.s32 %s21, %s28
      %s63 = sor.u32 %s61, %s62
      %p64 = scmp.eq.s32.totalorder %s63, 0
      %s66 = sadd.s32 %s65, 1
      %s67 = scalar_select %p64, %s65, %s66
      %p70 = pneg %p64
      %p71 = scmp.eq.s32.totalorder %s13, 1
      %p72 = por %p70, %p71
      %p73 = scmp.ne.s32.totalorder %s65, %s68
      %p74 = scmp.eq.s32.totalorder %s13, 0
      %p75 = por %p73, %p74
      %p76 = scmp.ne.s32.totalorder %s65, %s68
      %p77 = scmp.eq.s32.totalorder %s18, 1
      %p78 = por %p76, %p77
      %p79 = scmp.ne.s32.totalorder %s68, %s69
      %p80 = scmp.eq.s32.totalorder %s18, 0
      %p81 = por %p79, %p80
      %p82 = scmp.ne.s32.totalorder %s68, %s69
      %p83 = scmp.eq.s32.totalorder %s19, 1
      %p84 = por %p82, %p83
      %p86 = scmp.ne.s32.totalorder %s69, %s85
      %p87 = scmp.eq.s32.totalorder %s19, 0
      %p88 = por %p86, %p87
      %s90 = sadd.s32 %s89, 1
      %p93 = scmp.eq.s32.totalorder %s13, 1
      %p94 = scmp.ne.s32.totalorder %s89, %s91
      %p95 = scmp.eq.s32.totalorder %s13, 0
      %p96 = por %p94, %p95
      %p97 = scmp.ne.s32.totalorder %s89, %s91
      %p98 = scmp.eq.s32.totalorder %s18, 1
      %p99 = por %p97, %p98
      %p100 = scmp.ne.s32.totalorder %s91, %s92
      %p101 = scmp.eq.s32.totalorder %s18, 0
      %p102 = por %p100, %p101
      %p103 = scmp.ne.s32.totalorder %s91, %s92
      %p104 = scmp.eq.s32.totalorder %s19, 1
      %p105 = por %p103, %p104
      %p107 = scmp.ne.s32.totalorder %s92, %s106
      %p108 = scmp.eq.s32.totalorder %s19, 0
      %p109 = por %p107, %p108
      %s111 = sadd.s32 %s110, 1
      %p114 = scmp.eq.s32.totalorder %s13, 1
      %p115 = scmp.ne.s32.totalorder %s110, %s112
      %p116 = scmp.eq.s32.totalorder %s13, 0
      %p117 = por %p115, %p116
      %p118 = scmp.ne.s32.totalorder %s110, %s112
      %p119 = scmp.eq.s32.totalorder %s18, 1
      %p120 = por %p118, %p119
      %p121 = scmp.ne.s32.totalorder %s112, %s113
      %p122 = scmp.eq.s32.totalorder %s18, 0
      %p123 = por %p121, %p122
      %p124 = scmp.ne.s32.totalorder %s112, %s113
      %p125 = scmp.eq.s32.totalorder %s19, 1
      %p126 = por %p124, %p125
      %p128 = scmp.ne.s32.totalorder %s113, %s127
      %p129 = scmp.eq.s32.totalorder %s19, 0
      %p130 = por %p128, %p129
      %s131 = ssub.s32 %s20, %s32
      %p132 = scmp.eq.s32.totalorder %s131, 0
      %s134 = sadd.s32 %s133, 1
      %s135 = scalar_select %p132, %s133, %s134
      %p138 = pneg %p132
      %p139 = scmp.eq.s32.totalorder %s13, 1
      %p140 = por %p138, %p139
      %p141 = scmp.ne.s32.totalorder %s133, %s136
      %p142 = scmp.eq.s32.totalorder %s13, 0
      %p143 = por %p141, %p142
      %p144 = scmp.ne.s32.totalorder %s133, %s136
      %p145 = scmp.eq.s32.totalorder %s18, 1
      %p146 = por %p144, %p145
      %p147 = scmp.ne.s32.totalorder %s136, %s137
      %p148 = scmp.eq.s32.totalorder %s18, 0
      %p149 = por %p147, %p148
      %p150 = scmp.ne.s32.totalorder %s136, %s137
      %p151 = scmp.eq.s32.totalorder %s19, 1
      %p152 = por %p150, %p151
      %p154 = scmp.ne.s32.totalorder %s137, %s153
      %p155 = scmp.eq.s32.totalorder %s19, 0
      %p156 = por %p154, %p155
      %p157 = scmp.le.s32.totalorder 1, %s13
      %p158 = scmp.lt.s32.totalorder %s13, 3
      %p159 = pnand %p157, %p158
      %p160 = pneg %p159
      // Predicated region
      $region9: #{tpu_custom_call.1} parent=5 // pred_check
        _
      $region10: #{tpu_custom_call.1} parent=5 // pred_check_branch
        %162 = sbr.rel (%p159) target = $region12
      $region11: #{tpu_custom_call.1} parent=5 // pred_region
        %s163 = ssub.s32 %s13, 1
        // Predicated region
        $region13: #{tpu_custom_call.1} parent=11 // pred_check
          %p164 = pneg %p102
        $region14: #{tpu_custom_call.1} parent=11 // pred_check_branch
          %166 = sbr.rel (%p164) target = $region16
        $region15: #{tpu_custom_call.1} parent=11 // pred_region
          _
        $region16: #{tpu_custom_call.1} parent=11 // pred_fallthru
          _
        // Predicated region
        $region17: #{tpu_custom_call.1} parent=11 // pred_check
          %p167 = pneg %p123
        $region18: #{tpu_custom_call.1} parent=11 // pred_check_branch
          %169 = sbr.rel (%p167) target = $region20
        $region19: #{tpu_custom_call.1} parent=11 // pred_region
          _
        $region20: #{tpu_custom_call.1} parent=11 // pred_fallthru
          _
      $region12: #{tpu_custom_call.1} parent=5 // pred_fallthru
        _
      %p170 = scmp.lt.s32.totalorder %s13, 2
      // Predicated region
      $region21: #{tpu_custom_call.1} parent=5 // pred_check
        %p171 = pneg %p170
      $region22: #{tpu_custom_call.1} parent=5 // pred_check_branch
        %173 = sbr.rel (%p171) target = $region24
      $region23: #{tpu_custom_call.1} parent=5 // pred_region
        // Predicated region
        $region25: #{tpu_custom_call.1} parent=23 // pred_check
          %p174 = pneg %p47
        $region26: #{tpu_custom_call.1} parent=23 // pred_check_branch
          %176 = sbr.rel (%p174) target = $region28
        $region27: #{tpu_custom_call.1} parent=23 // pred_region
          %s177 = smul.u32 2, %s21
          %p178 = scmp.lt.s32.totalorder %s20, 1
          %s179 = scalar_select %p178, %s20, 1
          %p180 = scmp.lt.s32.totalorder %s177, 1
          %s181 = scalar_select %p180, %s177, 1
          %s182 = smul.addr %s179, 2
          %s183 = sadd.s32 %s181, %s182
          %s184 = smul.addr %s183, 2
          %s185 = scalar_lea.vmem %s0, %s184
          %s186 = smul.u32 2, %s21
        $region28: #{tpu_custom_call.1} parent=23 // pred_fallthru
          _
        // Predicated region
        $region29: #{tpu_custom_call.1} parent=23 // pred_check
          %p187 = pneg %p75
        $region30: #{tpu_custom_call.1} parent=23 // pred_check_branch
          %189 = sbr.rel (%p187) target = $region32
        $region31: #{tpu_custom_call.1} parent=23 // pred_region
          %s190 = smul.u32 2, %s21
          %p191 = scmp.lt.s32.totalorder %s20, 1
          %s192 = scalar_select %p191, %s20, 1
          %p193 = scmp.lt.s32.totalorder %s190, 1
          %s194 = scalar_select %p193, %s190, 1
          %s195 = smul.addr %s192, 2
          %s196 = sadd.s32 %s194, %s195
          %s197 = smul.addr %s196, 2
          %s198 = scalar_lea.vmem %s1, %s197
          %s199 = smul.u32 2, %s21
        $region32: #{tpu_custom_call.1} parent=23 // pred_fallthru
          _
      $region24: #{tpu_custom_call.1} parent=5 // pred_fallthru
        _
      %p200 = scmp.le.s32.totalorder 1, %s13
      %p201 = scmp.lt.s32.totalorder %s13, 3
      %p202 = pnand %p200, %p201
      %p203 = pneg %p202
      // Predicated region
      $region33: #{tpu_custom_call.1} parent=5 // pred_check
        _
      $region34: #{tpu_custom_call.1} parent=5 // pred_check_branch
        %205 = sbr.rel (%p202) target = $region36
      $region35: #{tpu_custom_call.1} parent=5 // pred_region
        %s206 = ssub.s32 %s13, 1
        %s207 = smul.u32 2, %s23
        %p208 = scmp.lt.s32.totalorder %s22, 1
        %s209 = scalar_select %p208, %s22, 1
        %p210 = scmp.lt.s32.totalorder %s207, 1
        %s211 = scalar_select %p210, %s207, 1
        %s212 = smul.addr %s209, 2
        %s213 = sadd.s32 %s211, %s212
        %s214 = smul.addr %s213, 2
        %s215 = scalar_lea.vmem %s0, %s214
        %p216 = pneg %p53
        %p217 = pneg %p50
        %s218 = smul.u32 2, %s23
        %p219 = scmp.lt.s32.totalorder %s22, 1
        %s220 = scalar_select %p219, %s22, 1
        %p221 = scmp.lt.s32.totalorder %s218, 1
        %s222 = scalar_select %p221, %s218, 1
        %s223 = smul.addr %s220, 2
        %s224 = sadd.s32 %s222, %s223
        %s225 = smul.addr %s224, 2
        %s226 = scalar_lea.vmem %s1, %s225
        %p227 = pneg %p81
        %p228 = pneg %p78
        %p229 = pneg %p102
        %p230 = pneg %p99
        %p231 = pneg %p123
        %p232 = pneg %p120
        %p233 = pneg %p149
        %p234 = pneg %p146
        %s235 = sand.u32 %s136, 1
        %s236 = scalar_lea.sflag [#allocation5], %s235
        %s237 = sand.u32 %s136, 1
        %s238 = smul.addr %s237, 8
        %s239 = scalar_lea.vmem [#allocation4], %s238
        %s240 = smul.u32 2, %s23
        %p241 = scmp.lt.s32.totalorder %s22, 1
        %s242 = scalar_select %p241, %s22, 1
        %p243 = scmp.lt.s32.totalorder %s240, 1
        %s244 = scalar_select %p243, %s240, 1
        %s245 = smul.addr %s242, 2
        %s246 = sadd.s32 %s244, %s245
        %s247 = smul.addr %s246, 2
        %s248 = scalar_lea.vmem %s0, %s247
        %s249 = smul.u32 2, %s23
        %s250 = smul.u32 2, %s23
        %p251 = scmp.lt.s32.totalorder %s22, 1
        %s252 = scalar_select %p251, %s22, 1
        %p253 = scmp.lt.s32.totalorder %s250, 1
        %s254 = scalar_select %p253, %s250, 1
        %s255 = smul.addr %s252, 2
        %s256 = sadd.s32 %s254, %s255
        %s257 = smul.addr %s256, 2
        %s258 = scalar_lea.vmem %s1, %s257
        %s259 = smul.u32 2, %s23
        %p260 = scmp.eq.s32.totalorder %s23, 0
        // Predicated region
        $region37: #{tpu_custom_call.1} parent=35 // pred_check
          %p261 = pneg %p260
        $region38: #{tpu_custom_call.1} parent=35 // pred_check_branch
          %263 = sbr.rel (%p261) target = $region40
        $region39: #{tpu_custom_call.1} parent=35 // pred_region
          %vm264 = vcmask 64512
          %265 = vst.msk [vmem:[#allocation2] sm:$0xff] %vm264, 0.0
          %266 = vst.msk [vmem:[#allocation3] sm:$0xff] %vm264, 0.0
        $region40: #{tpu_custom_call.1} parent=35 // pred_fallthru
          _
        %v267 = vld [vmem:[%s3] sm:$0xff]
        %v268 = vld [vmem:[%s248] sm:$0xf]
        %v269 = vmul.f32 %v268, 3.5
        %v271 = vlaneseq
        %v272 = vshrl.u32 %v271, 7
        %v273 = vsub.s32 0, %v272
        %v274 = vrot.slane %v269, %v273
        %v275 = vlaneseq
        %v276 = vshrl.u32 %v275, 7
        %v277 = vsub.s32 2, %v276
        %v278 = vrot.slane %v269, %v277
        %v281 = vlaneseq
        %v282 = vshrl.u32 %v281, 7
        %v283 = vsub.s32 0, %v282
        %v284 = vrot.slane %v274, %v283
        %v285 = vlaneseq
        %v286 = vshrl.u32 %v285, 7
        %v287 = vsub.s32 0, %v286
        %v288 = vrot.slane %v278, %v287
        %290 = vset.pattern.permute.xlu0 0
        %291 = vperm.xlu0 %290, %v267
        %v292 = vpop.permute.xlu0 %291
        %v294 = vadd.f32 %v284, %v292
        %v295 = vadd.f32 %v288, %v292
        %v296 = vand.u32 2147483647, %v294
        %v297 = vand.u32 2147483647, %v295
        %v298 = vsub.f32 1.0, %v296
        %v299 = vsub.f32 1.0, %v297
        %v300 = vmax.f32 %v298, 0.0
        %v301 = vmax.f32 %v299, 0.0
        %v302 = vlaneseq
        %v303 = vshrl.u32 %v302, 7
        %v304 = vsub.s32 1, %v303
        %v305 = vrot.slane %v269, %v304
        %v306 = vlaneseq
        %v307 = vshrl.u32 %v306, 7
        %v308 = vsub.s32 3, %v307
        %v309 = vrot.slane %v269, %v308
        %v312 = vlaneseq
        %v313 = vshrl.u32 %v312, 7
        %v314 = vsub.s32 1, %v313
        %v315 = vrot.slane %v305, %v314
        %v316 = vlaneseq
        %v317 = vshrl.u32 %v316, 7
        %v318 = vsub.s32 1, %v317
        %v319 = vrot.slane %v309, %v318
        %v320 = vadd.f32 %v315, %v292
        %v321 = vadd.f32 %v319, %v292
        %v322 = vand.u32 2147483647, %v320
        %v323 = vand.u32 2147483647, %v321
        %v324 = vsub.f32 1.0, %v322
        %v325 = vsub.f32 1.0, %v323
        %v326 = vmax.f32 %v324, 0.0
        %v327 = vmax.f32 %v325, 0.0
        %v328 = vld [vmem:[#allocation2] sm:$0xff]
        %329 = vmatprep.subr.mxu0 0.0
        %330 = vmatpush1.xpose.msra.mxu0 0.0
        %331 = vmatprep.subr.mxu0 0.0
        %332 = vmatpush1.xpose.msra.mxu0 0.0
        %333 = vmatprep.subr.mxu0 0.0
        %334 = vmatpush1.xpose.msra.mxu0 0.0
        %335 = vmatprep.subr.mxu0 0.0
        %336 = vmatpush1.xpose.msra.mxu0 0.0
        %337 = vmatprep.subr.mxu0 0.0
        %338 = vmatpush1.xpose.msra.mxu0 0.0
        %339 = vmatprep.subr.mxu0 0.0
        %340 = vmatpush1.xpose.msra.mxu0 0.0
        %341 = vmatprep.subr.mxu0 0.0
        %342 = vmatpush1.xpose.msra.mxu0 0.0
        %343 = vmatprep.subr.mxu0 0.0
        %344 = vmatpush1.xpose.msra.mxu0 0.0
        %345 = vmatprep.subr.mxu0 0.0
        %346 = vmatpush1.xpose.msra.mxu0 0.0
        %347 = vmatprep.subr.mxu0 0.0
        %348 = vmatpush1.xpose.msra.mxu0 0.0
        %349 = vmatprep.subr.mxu0 0.0
        %350 = vmatpush1.xpose.msra.mxu0 0.0
        %351 = vmatprep.subr.mxu0 0.0
        %352 = vmatpush1.xpose.msra.mxu0 0.0
        %353 = vmatprep.subr.mxu0 0.0
        %354 = vmatpush1.xpose.msra.mxu0 0.0
        %355 = vmatprep.subr.mxu0 0.0
        %356 = vmatpush1.xpose.msra.mxu0 0.0
        %357 = vmatprep.subr.mxu0 0.0
        %358 = vmatpush1.xpose.msra.mxu0 0.0
        %359 = vmatprep.subr.mxu0 %v301
        %360 = vmatpush1.xpose.msra.mxu0 %v300
        %361 = vmatprep.subr.mxu0 0.0
        %362 = vmatpush2.xpose.msra.mxu0 0.0
        %363 = vmatprep.subr.mxu0 0.0
        %364 = vmatpush2.xpose.msra.mxu0 0.0
        %365 = vmatprep.subr.mxu0 0.0
        %366 = vmatpush2.xpose.msra.mxu0 0.0
        %367 = vmatprep.subr.mxu0 0.0
        %368 = vmatpush2.xpose.msra.mxu0 0.0
        %369 = vmatprep.subr.mxu0 0.0
        %370 = vmatpush2.xpose.msra.mxu0 0.0
        %371 = vmatprep.subr.mxu0 0.0
        %372 = vmatpush2.xpose.msra.mxu0 0.0
        %373 = vmatprep.subr.mxu0 0.0
        %374 = vmatpush2.xpose.msra.mxu0 0.0
        %375 = vmatprep.subr.mxu0 0.0
        %376 = vmatpush2.xpose.msra.mxu0 0.0
        %377 = vmatprep.subr.mxu0 0.0
        %378 = vmatpush2.xpose.msra.mxu0 0.0
        %379 = vmatprep.subr.mxu0 0.0
        %380 = vmatpush2.xpose.msra.mxu0 0.0
        %381 = vmatprep.subr.mxu0 0.0
        %382 = vmatpush2.xpose.msra.mxu0 0.0
        %383 = vmatprep.subr.mxu0 0.0
        %384 = vmatpush2.xpose.msra.mxu0 0.0
        %385 = vmatprep.subr.mxu0 0.0
        %386 = vmatpush2.xpose.msra.mxu0 0.0
        %387 = vmatprep.subr.mxu0 0.0
        %388 = vmatpush2.xpose.msra.mxu0 0.0
        %389 = vmatprep.subr.mxu0 0.0
        %390 = vmatpush2.xpose.msra.mxu0 0.0
        %391 = vmatprep.subr.mxu0 0.0
        %392 = vmatpush2.xpose.msra.mxu0 0.0
        %393 = vmatprep.mubr.f32.mxu0 %v327
        %394 = vmatmul.mubr.f32.gmra.mxu0 %v326
        %v395 = vpop.f32.mrf.mxu0
        %v396 = vadd.f32 0.0, %v395
        %v397 = vpop.f32.mrf.mxu0
        %398 = vdwg.mxu0
        %v399 = vadd.f32 %v328, %v396
        %vm400 = vcmask 64512
        %401 = vst.msk [vmem:[#allocation2] sm:$0xff] %vm400, %v399
        %v402 = vld [vmem:[%s258] sm:$0xf]
        %v403 = vmul.f32 %v402, 3.5
        %v405 = vlaneseq
        %v406 = vshrl.u32 %v405, 7
        %v407 = vsub.s32 0, %v406
        %v408 = vrot.slane %v403, %v407
        %v409 = vlaneseq
        %v410 = vshrl.u32 %v409, 7
        %v411 = vsub.s32 2, %v410
        %v412 = vrot.slane %v403, %v411
        %v415 = vlaneseq
        %v416 = vshrl.u32 %v415, 7
        %v417 = vsub.s32 0, %v416
        %v418 = vrot.slane %v408, %v417
        %v419 = vlaneseq
        %v420 = vshrl.u32 %v419, 7
        %v421 = vsub.s32 0, %v420
        %v422 = vrot.slane %v412, %v421
        %v423 = vadd.f32 %v418, %v292
        %v424 = vadd.f32 %v422, %v292
        %v425 = vand.u32 2147483647, %v423
        %v426 = vand.u32 2147483647, %v424
        %v427 = vsub.f32 1.0, %v425
        %v428 = vsub.f32 1.0, %v426
        %v429 = vmax.f32 %v427, 0.0
        %v430 = vmax.f32 %v428, 0.0
        %v431 = vlaneseq
        %v432 = vshrl.u32 %v431, 7
        %v433 = vsub.s32 1, %v432
        %v434 = vrot.slane %v403, %v433
        %v435 = vlaneseq
        %v436 = vshrl.u32 %v435, 7
        %v437 = vsub.s32 3, %v436
        %v438 = vrot.slane %v403, %v437
        %v441 = vlaneseq
        %v442 = vshrl.u32 %v441, 7
        %v443 = vsub.s32 1, %v442
        %v444 = vrot.slane %v434, %v443
        %v445 = vlaneseq
        %v446 = vshrl.u32 %v445, 7
        %v447 = vsub.s32 1, %v446
        %v448 = vrot.slane %v438, %v447
        %v449 = vadd.f32 %v444, %v292
        %v450 = vadd.f32 %v448, %v292
        %v451 = vand.u32 2147483647, %v449
        %v452 = vand.u32 2147483647, %v450
        %v453 = vsub.f32 1.0, %v451
        %v454 = vsub.f32 1.0, %v452
        %v455 = vmax.f32 %v453, 0.0
        %v456 = vmax.f32 %v454, 0.0
        %v457 = vld [vmem:[#allocation3] sm:$0xff]
        %458 = vmatprep.subr.mxu0 0.0
        %459 = vmatpush1.xpose.msra.mxu0 0.0
        %460 = vmatprep.subr.mxu0 0.0
        %461 = vmatpush1.xpose.msra.mxu0 0.0
        %462 = vmatprep.subr.mxu0 0.0
        %463 = vmatpush1.xpose.msra.mxu0 0.0
        %464 = vmatprep.subr.mxu0 0.0
        %465 = vmatpush1.xpose.msra.mxu0 0.0
        %466 = vmatprep.subr.mxu0 0.0
        %467 = vmatpush1.xpose.msra.mxu0 0.0
        %468 = vmatprep.subr.mxu0 0.0
        %469 = vmatpush1.xpose.msra.mxu0 0.0
        %470 = vmatprep.subr.mxu0 0.0
        %471 = vmatpush1.xpose.msra.mxu0 0.0
        %472 = vmatprep.subr.mxu0 0.0
        %473 = vmatpush1.xpose.msra.mxu0 0.0
        %474 = vmatprep.subr.mxu0 0.0
        %475 = vmatpush1.xpose.msra.mxu0 0.0
        %476 = vmatprep.subr.mxu0 0.0
        %477 = vmatpush1.xpose.msra.mxu0 0.0
        %478 = vmatprep.subr.mxu0 0.0
        %479 = vmatpush1.xpose.msra.mxu0 0.0
        %480 = vmatprep.subr.mxu0 0.0
        %481 = vmatpush1.xpose.msra.mxu0 0.0
        %482 = vmatprep.subr.mxu0 0.0
        %483 = vmatpush1.xpose.msra.mxu0 0.0
        %484 = vmatprep.subr.mxu0 0.0
        %485 = vmatpush1.xpose.msra.mxu0 0.0
        %486 = vmatprep.subr.mxu0 0.0
        %487 = vmatpush1.xpose.msra.mxu0 0.0
        %488 = vmatprep.subr.mxu0 %v430
        %489 = vmatpush1.xpose.msra.mxu0 %v429
        %490 = vmatprep.subr.mxu0 0.0
        %491 = vmatpush2.xpose.msra.mxu0 0.0
        %492 = vmatprep.subr.mxu0 0.0
        %493 = vmatpush2.xpose.msra.mxu0 0.0
        %494 = vmatprep.subr.mxu0 0.0
        %495 = vmatpush2.xpose.msra.mxu0 0.0
        %496 = vmatprep.subr.mxu0 0.0
        %497 = vmatpush2.xpose.msra.mxu0 0.0
        %498 = vmatprep.subr.mxu0 0.0
        %499 = vmatpush2.xpose.msra.mxu0 0.0
        %500 = vmatprep.subr.mxu0 0.0
        %501 = vmatpush2.xpose.msra.mxu0 0.0
        %502 = vmatprep.subr.mxu0 0.0
        %503 = vmatpush2.xpose.msra.mxu0 0.0
        %504 = vmatprep.subr.mxu0 0.0
        %505 = vmatpush2.xpose.msra.mxu0 0.0
        %506 = vmatprep.subr.mxu0 0.0
        %507 = vmatpush2.xpose.msra.mxu0 0.0
        %508 = vmatprep.subr.mxu0 0.0
        %509 = vmatpush2.xpose.msra.mxu0 0.0
        %510 = vmatprep.subr.mxu0 0.0
        %511 = vmatpush2.xpose.msra.mxu0 0.0
        %512 = vmatprep.subr.mxu0 0.0
        %513 = vmatpush2.xpose.msra.mxu0 0.0
        %514 = vmatprep.subr.mxu0 0.0
        %515 = vmatpush2.xpose.msra.mxu0 0.0
        %516 = vmatprep.subr.mxu0 0.0
        %517 = vmatpush2.xpose.msra.mxu0 0.0
        %518 = vmatprep.subr.mxu0 0.0
        %519 = vmatpush2.xpose.msra.mxu0 0.0
        %520 = vmatprep.subr.mxu0 0.0
        %521 = vmatpush2.xpose.msra.mxu0 0.0
        %522 = vmatprep.mubr.f32.mxu0 %v456
        %523 = vmatmul.mubr.f32.gmra.mxu0 %v455
        %v524 = vpop.f32.mrf.mxu0
        %v525 = vadd.f32 0.0, %v524
        %v526 = vpop.f32.mrf.mxu0
        %527 = vdwg.mxu0
        %v528 = vadd.f32 %v457, %v525
        %529 = vst.msk [vmem:[#allocation3] sm:$0xff] %vm400, %v528
        // Predicated region
        $region41: #{tpu_custom_call.1} parent=35 // pred_check
          %p530 = pneg %p260
        $region42: #{tpu_custom_call.1} parent=35 // pred_check_branch
          %532 = sbr.rel (%p530) target = $region44
        $region43: #{tpu_custom_call.1} parent=35 // pred_region
          %v533 = vld [vmem:[#allocation2] sm:$0xff]
          %v534 = vmul.f32 %v533, 0.00390625
          %v535 = vld [vmem:[#allocation3] sm:$0xff]
          %v536 = vmul.f32 %v535, 0.00390625
          %v537 = vsub.f32 %v534, %v536
          %v538 = vand.u32 2147483647, %v537
          %vm539 = vcmp.lt.f32.partialorder %v538, 0.01
          %v540 = vmul.f32 %v538, 0.5
          %v541 = vmul.f32 %v540, %v538
          %v542 = vrcp.pop 0.01
          %v543 = vmul.f32 %v541, %v542
          %v544 = vsub.f32 %v538, 0.005
          %v545 = vsel %vm539, %v543, %v544
          %546 = vst.msk [vmem:[%s239] sm:$0xff] %vm400, %v545
        $region44: #{tpu_custom_call.1} parent=35 // pred_fallthru
          _
        %s547 = sand.u32 %s136, 1
        %s548 = scalar_lea.sflag [#allocation5], %s547
        %s549 = sand.u32 %s136, 1
        %s550 = smul.addr %s549, 8
        %s551 = scalar_lea.vmem [#allocation4], %s550
        // Predicated region
        $region45: #{tpu_custom_call.1} parent=35 // pred_check
          %p552 = pneg %p146
        $region46: #{tpu_custom_call.1} parent=35 // pred_check_branch
          %554 = sbr.rel (%p552) target = $region48
        $region47: #{tpu_custom_call.1} parent=35 // pred_region
          %s556 = ssub.s32 128, 128
          %557 = vsyncadd %s548, %s556
          %s558 = smul.addr %s22, 128
          %s559 = scalar_lea.hbm %s4, %s558
          %s561 = sshll.u32 %s551, 4
          %s562 = int_to_ptr.vmem [resolvable:$true] %s561
          %564 = dma.vmem_to_hbm [thread:$0]  %s562, 128, %s559, %s548
        $region48: #{tpu_custom_call.1} parent=35 // pred_fallthru
          _
      $region36: #{tpu_custom_call.1} parent=5 // pred_fallthru
        _
      %p565 = scmp.le.s32.totalorder 2, %s13
      // Predicated region
      $region49: #{tpu_custom_call.1} parent=5 // pred_check
        %p566 = pneg %p565
      $region50: #{tpu_custom_call.1} parent=5 // pred_check_branch
        %568 = sbr.rel (%p566) target = $region52
      $region51: #{tpu_custom_call.1} parent=5 // pred_region
        %s569 = ssub.s32 %s13, 2
        // Predicated region
        $region53: #{tpu_custom_call.1} parent=51 // pred_check
          %p570 = pneg %p152
        $region54: #{tpu_custom_call.1} parent=51 // pred_check_branch
          %572 = sbr.rel (%p570) target = $region56
        $region55: #{tpu_custom_call.1} parent=51 // pred_region
          %s573 = sand.u32 %s137, 1
          %s574 = scalar_lea.sflag [#allocation5], %s573
          %s575 = sand.u32 %s137, 1
          %s576 = smul.addr %s575, 8
          %s577 = scalar_lea.vmem [#allocation4], %s576
          %578 = dma.done %s574, 128
        $region56: #{tpu_custom_call.1} parent=51 // pred_fallthru
          _
      $region52: #{tpu_custom_call.1} parent=5 // pred_fallthru
        _
    $region6: #{tpu_custom_call.1} parent=1 // loop_footer
      %s17 = sadd.s32 1, %s13
    $region7: #{tpu_custom_call.1} parent=1 // loop_footer_branch
      %12 = sbr.rel target = $region3
    $region8: #{tpu_custom_call.1} parent=1 // loop_exit
      _
    %579 = vsyncpa [#allocation5], 1
    %s580 = scalar_lea.sflag [#allocation5], 1
    %581 = vsyncpa %s580, 1

</llo_original>
